<compile_context>
chip_gen: v7x
topology: tpu7x:2x2x1
jax: 0.10.0
libtpu: 0.0.40
codegen_flags: <defaults>
</compile_context>

<pallas_src>
import jax
import jax.numpy as jnp
from jax.experimental import pallas as pl
from jax.experimental.pallas import tpu as pltpu


_LW = 128          # lane width of the persistent accumulators
_CHUNK_CAP = 64    # max statically-unrolled 128-lane chunks per channel plane


def _lowest(dtype):
    dtype = jnp.dtype(dtype)
    if jnp.issubdtype(dtype, jnp.floating):
        return float("-inf")
    return int(jnp.iinfo(dtype).min)


def _default_tile_target_bytes():
    """Per-generation input-block byte target (Pallas double-buffers it)."""
    try:
        kind = jax.devices()[0].device_kind.lower()
    except Exception:
        kind = ""
    if "v5 lite" in kind or "v5e" in kind or "v5lite" in kind:
        return 6 * 1024 * 1024     # tighter scoped-VMEM default on v5e
    if "v7" in kind:
        return 16 * 1024 * 1024    # 3.2 TB/s HBM but only 64 MiB VMEM
    return 12 * 1024 * 1024        # v6e / default


def _pick_tiles(C, D, HW, itemsize, target_bytes):
    """Pick (tc, thw): thw = lane extent per block (multiple of 128, capped so the
    in-kernel static chunk unroll stays small); tc = channels per block (divisor of C)
    filling the remaining byte budget."""
    total_chunks = pl.cdiv(HW, _LW)
    budget_chunks = max(1, target_bytes // (D * _LW * itemsize))
    n_chunks = max(1, min(total_chunks, _CHUNK_CAP, budget_chunks))
    thw = n_chunks * _LW
    tc = 1
    for d in range(1, C + 1):
        if C % d == 0 and d * D * thw * itemsize <= target_bytes:
            tc = d
    return tc, thw


def _pool_small_kernel(x_ref, max_ref, sum_ref):
    # Tiny-input fast path: whole (B, C, D, HW) array in VMEM, single grid step.
    for b in range(x_ref.shape[0]):
        x = x_ref[b]                                     # (C, D, HW), input dtype
        xm = jnp.max(x, axis=0)                          # (D, HW)
        xs = jnp.sum(x.astype(jnp.float32), axis=0)      # (D, HW) f32
        max_ref[b] = jnp.max(xm.astype(jnp.float32), axis=-1, keepdims=True)
        sum_ref[b] = jnp.sum(xs, axis=-1, keepdims=True)


def _make_pool_tiled_kernel(tc, thw, n_chunks, nh_inner, HW, D, needs_mask):
    def kernel(x_ref, max_ref, sum_ref, acc_max, acc_sum):
        # x_ref: (tc, D, thw) block of the native-layout (B, C, D, HW) array.
        # max_ref / sum_ref: (1, D, 1) pooled stats per (batch, split-group).
        # acc_max / acc_sum: (D, 128) running accumulators persisting across the
        # reduction ("arbitrary") grid axes.
        s_idx = pl.program_id(1)
        ct = pl.program_id(2)
        ht = pl.program_id(3)
        nc = pl.num_programs(2)
        nh = pl.num_programs(3)

        @pl.when((ct == 0) & (ht == 0))
        def _init():
            acc_max[...] = jnp.full_like(acc_max, _lowest(acc_max.dtype))
            acc_sum[...] = jnp.zeros_like(acc_sum)

        if needs_mask:
            lane = jax.lax.broadcasted_iota(jnp.int32, (D, _LW), 1)
            col0 = (s_idx * nh_inner + ht) * thw     # global column of this block
            neg = _lowest(x_ref.dtype)

        def chan_body(c, carry):
            m, s = carry
            # Dynamic index only on the leading (untiled) channel dim; static,
            # lane-aligned chunk slices -> full-rate loads, no relayouts, no f32
            # copy of the tile.
            for j in range(n_chunks):
                xc = x_ref[c, :, pl.ds(j * _LW, _LW)]        # (D, 128), input dtype
                if needs_mask:
                    valid = (col0 + (j * _LW) + lane) < HW
                    m = jnp.maximum(m, jnp.where(valid, xc, neg))
                    s = s + jnp.where(valid, xc.astype(jnp.float32), 0.0)
                else:
                    m = jnp.maximum(m, xc)
                    s = s + xc.astype(jnp.float32)
            return m, s

        unroll = 2 if (n_chunks <= 16 and tc % 2 == 0) else 1
        m, s = jax.lax.fori_loop(0, tc, chan_body,
                                 (acc_max[...], acc_sum[...]), unroll=unroll)
        acc_max[...] = m
        acc_sum[...] = s

        @pl.when((ct == nc - 1) & (ht == nh - 1))
        def _finalize():
            # One cross-lane (XLU) reduce per (batch, split-group).
            max_ref[0] = jnp.max(acc_max[...].astype(jnp.float32), axis=-1,
                                 keepdims=True)
            sum_ref[0] = jnp.sum(acc_sum[...], axis=-1, keepdims=True)

    return kernel


def disparity_attention_pallas(x, w1, w2, *, tile_target_bytes=None,
                               small_path_max_bytes=2 * 1024 * 1024):
    """x: (B, C, D, H, W); w1: (D//r, D) = da[0].weight; w2: (D, D//r) = da[2].weight.

    Returns (B, 1, D, 1, 1), matching DisparityAttention.forward.
    """
    B, C, D, H, W = x.shape
    HW = H * W
    itemsize = jnp.dtype(x.dtype).itemsize
    total_bytes = B * C * D * HW * itemsize

    # Free, contiguous reshape: disparity on sublanes, H*W on lanes.
    x4 = x.reshape(B, C, D, HW)

    cost = pl.CostEstimate(flops=2 * B * C * D * HW, transcendentals=0,
                           bytes_accessed=total_bytes + 8 * B * D)

    if total_bytes <= small_path_max_bytes:
        # Tiny input: one grid step removes virtually all launch / pipeline cost.
        mx, sm = pl.pallas_call(
            _pool_small_kernel,
            out_shape=(jax.ShapeDtypeStruct((B, D, 1), jnp.float32),
                       jax.ShapeDtypeStruct((B, D, 1), jnp.float32)),
            cost_estimate=cost,
        )(x4)
        mx = mx.reshape(B, D)
        sm = sm.reshape(B, D)
    else:
        if tile_target_bytes is None:
            tile_target_bytes = _default_tile_target_bytes()
        tc, thw = _pick_tiles(C, D, HW, itemsize, tile_target_bytes)
        n_chunks = thw // _LW
        nc = C // tc
        nh = pl.cdiv(HW, thw)
        # Megacore fallback (v7x has 2 TensorCores): with odd B one core would idle on
        # the batch axis, so split the HW-block axis into two "parallel" groups whose
        # partial (max, sum) rows are combined in the JAX epilogue.
        n_split = 2 if (B % 2 == 1 and nh >= 2 and nh % 2 == 0) else 1
        nh_inner = nh // n_split
        needs_mask = (HW % thw) != 0

        kernel = _make_pool_tiled_kernel(tc, thw, n_chunks, nh_inner, HW, D,
                                         needs_mask)
        mx_p, sm_p = pl.pallas_call(
            kernel,
            out_shape=(jax.ShapeDtypeStruct((B * n_split, D, 1), jnp.float32),
                       jax.ShapeDtypeStruct((B * n_split, D, 1), jnp.float32)),
            grid_spec=pltpu.PrefetchScalarGridSpec(
                num_scalar_prefetch=0,
                grid=(B, n_split, nc, nh_inner),
                in_specs=[
                    pl.BlockSpec((None, tc, D, thw),
                                 lambda b, s, i, j: (b, i, 0, s * nh_inner + j)),
                ],
                out_specs=[
                    pl.BlockSpec((1, D, 1),
                                 lambda b, s, i, j: (b * n_split + s, 0, 0)),
                    pl.BlockSpec((1, D, 1),
                                 lambda b, s, i, j: (b * n_split + s, 0, 0)),
                ],
                scratch_shapes=[
                    pltpu.VMEM((D, _LW), x.dtype),       # running max (input dtype)
                    pltpu.VMEM((D, _LW), jnp.float32),   # running sum (f32)
                ],
            ),
            compiler_params=pltpu.CompilerParams(
                dimension_semantics=("parallel", "parallel", "arbitrary",
                                     "arbitrary"),
                vmem_limit_bytes=48 * 1024 * 1024,
            ),
            cost_estimate=cost,
        )(x4)
        mx = jnp.max(mx_p.reshape(B, n_split, D), axis=1)
        sm = jnp.sum(sm_p.reshape(B, n_split, D), axis=1)

    av = sm / jnp.float32(C * HW)                        # global mean over (C, H, W)

    # Tiny shared MLP (D -> D//r -> D) + sigmoid epilogue in plain JAX: a (B, D) x
    # (D, D//r) matmul would only waste padded MXU tiles / VMEM inside the kernel.
    w1 = jnp.asarray(w1, jnp.float32)
    w2 = jnp.asarray(w2, jnp.float32)

    def da(v):                                           # v: (B, D)
        return jnp.maximum(v @ w1.T, 0.0) @ w2.T

    out = jax.nn.sigmoid(da(mx) + da(av))                # (B, D)
    return out[:, None, :, None, None]                   # (B, 1, D, 1, 1)


def disparity_attention_reference(x, w1, w2):
    """Pure-JAX reference mirroring the PyTorch forward."""
    xt = jnp.transpose(x, (0, 2, 1, 3, 4))               # (B, D, C, H, W)
    mx = jnp.max(xt, axis=(2, 3, 4))                     # (B, D)
    av = jnp.mean(xt, axis=(2, 3, 4))                    # (B, D)

    def da(v):
        return jnp.maximum(v @ w1.T, 0.0) @ w2.T

    out = jax.nn.sigmoid(da(mx) + da(av))
    return out[:, None, :, None, None]


if __name__ == "__main__":
    key = jax.random.PRNGKey(0)

    def run_case(key, *, B, C, D, H, W, reduction, **kw):
        kx, k1, k2, key = jax.random.split(key, 4)
        Dr = max(1, D // reduction)
        x = jax.random.normal(kx, (B, C, D, H, W), dtype=jnp.float32)
        w1 = 0.1 * jax.random.normal(k1, (Dr, D), dtype=jnp.float32)   # da[0].weight
        w2 = 0.1 * jax.random.normal(k2, (D, Dr), dtype=jnp.float32)   # da[2].weight
        out = jax.block_until_ready(disparity_attention_pallas(x, w1, w2, **kw))
        ref = disparity_attention_reference(x, w1, w2)
        assert out.shape == (B, 1, D, 1, 1)
        assert jnp.allclose(out, ref, atol=1e-5, rtol=1e-5), (B, C, D, H, W)
        return key

    # 1) Module-typical tiny shape -> single-step small path.
    key = run_case(key, B=2, C=4, D=32, H=8, W=8, reduction=16)
    # 2) Tiled streaming path: channel tiling (nc=3), masked HW tail (400 % 128 != 0)
    #    and the odd-B megacore split (n_split=2).
    key = run_case(key, B=1, C=3, D=32, H=20, W=20, reduction=16,
                   small_path_max_bytes=0, tile_target_bytes=20_000)
    # 3) Tiled path with a multi-chunk block (13 static lane chunks + masked tail,
    #    fori_loop over channels).
    key = run_case(key, B=1, C=2, D=8, H=40, W=40, reduction=4,
                   small_path_max_bytes=0)

    print("KERNEL_OK")
</pallas_src>

<mosaic_0001>
module attributes {stable_mosaic.version = 11 : i64} {
  func.func @_pool_small_kernel(%arg0: memref<2x4x32x64xf32, #tpu.memory_space<vmem>>, %arg1: memref<2x32x1xf32, #tpu.memory_space<vmem>>, %arg2: memref<2x32x1xf32, #tpu.memory_space<vmem>>) attributes {dimension_semantics = [], scalar_prefetch = 0 : i64, scratch_operands = 0 : i64, tpu.core_type = #tpu.core_type<tc>} {
    %c0 = arith.constant 0 : index
    %c0_0 = arith.constant 0 : index
    %c0_1 = arith.constant 0 : index
    %c0_2 = arith.constant 0 : index
    %0 = vector.load %arg0[%c0, %c0_0, %c0_1, %c0_2] : memref<2x4x32x64xf32, #tpu.memory_space<vmem>>, vector<1x4x32x64xf32>
    %1 = vector.shape_cast %0 : vector<1x4x32x64xf32> to vector<4x32x64xf32>
    %cst = arith.constant dense<0xFF800000> : vector<32x64xf32>
    %2 = vector.multi_reduction <maximumf>, %1, %cst [0] : vector<4x32x64xf32> to vector<32x64xf32>
    %cst_3 = arith.constant dense<0.000000e+00> : vector<32x64xf32>
    %3 = vector.multi_reduction <add>, %1, %cst_3 [0] : vector<4x32x64xf32> to vector<32x64xf32>
    %cst_4 = arith.constant dense<0xFF800000> : vector<32xf32>
    %4 = vector.multi_reduction <maximumf>, %2, %cst_4 [1] : vector<32x64xf32> to vector<32xf32>
    %5 = vector.shape_cast %4 : vector<32xf32> to vector<32x1xf32>
    %c0_5 = arith.constant 0 : index
    %c0_6 = arith.constant 0 : index
    %c0_7 = arith.constant 0 : index
    %6 = vector.load %arg1[%c0_5, %c0_6, %c0_7] : memref<2x32x1xf32, #tpu.memory_space<vmem>>, vector<1x32x1xf32>
    %7 = vector.shape_cast %6 : vector<1x32x1xf32> to vector<32x1xf32>
    %8 = vector.shape_cast %5 : vector<32x1xf32> to vector<1x32x1xf32>
    tpu.vector_store %arg1[%c0_5, %c0_6, %c0_7], %8 {strides = array<i32>} : memref<2x32x1xf32, #tpu.memory_space<vmem>>, vector<1x32x1xf32>,
    %cst_8 = arith.constant dense<0.000000e+00> : vector<32xf32>
    %9 = vector.multi_reduction <add>, %3, %cst_8 [1] : vector<32x64xf32> to vector<32xf32>
    %10 = vector.shape_cast %9 : vector<32xf32> to vector<32x1xf32>
    %c0_9 = arith.constant 0 : index
    %c0_10 = arith.constant 0 : index
    %c0_11 = arith.constant 0 : index
    %11 = vector.load %arg2[%c0_9, %c0_10, %c0_11] : memref<2x32x1xf32, #tpu.memory_space<vmem>>, vector<1x32x1xf32>
    %12 = vector.shape_cast %11 : vector<1x32x1xf32> to vector<32x1xf32>
    %13 = vector.shape_cast %10 : vector<32x1xf32> to vector<1x32x1xf32>
    tpu.vector_store %arg2[%c0_9, %c0_10, %c0_11], %13 {strides = array<i32>} : memref<2x32x1xf32, #tpu.memory_space<vmem>>, vector<1x32x1xf32>,
    %c1 = arith.constant 1 : index
    %c0_12 = arith.constant 0 : index
    %c0_13 = arith.constant 0 : index
    %c0_14 = arith.constant 0 : index
    %14 = vector.load %arg0[%c1, %c0_12, %c0_13, %c0_14] : memref<2x4x32x64xf32, #tpu.memory_space<vmem>>, vector<1x4x32x64xf32>
    %15 = vector.shape_cast %14 : vector<1x4x32x64xf32> to vector<4x32x64xf32>
    %cst_15 = arith.constant dense<0xFF800000> : vector<32x64xf32>
    %16 = vector.multi_reduction <maximumf>, %15, %cst_15 [0] : vector<4x32x64xf32> to vector<32x64xf32>
    %cst_16 = arith.constant dense<0.000000e+00> : vector<32x64xf32>
    %17 = vector.multi_reduction <add>, %15, %cst_16 [0] : vector<4x32x64xf32> to vector<32x64xf32>
    %cst_17 = arith.constant dense<0xFF800000> : vector<32xf32>
    %18 = vector.multi_reduction <maximumf>, %16, %cst_17 [1] : vector<32x64xf32> to vector<32xf32>
    %19 = vector.shape_cast %18 : vector<32xf32> to vector<32x1xf32>
    %c1_18 = arith.constant 1 : index
    %c0_19 = arith.constant 0 : index
    %c0_20 = arith.constant 0 : index
    %20 = vector.load %arg1[%c1_18, %c0_19, %c0_20] : memref<2x32x1xf32, #tpu.memory_space<vmem>>, vector<1x32x1xf32>
    %21 = vector.shape_cast %20 : vector<1x32x1xf32> to vector<32x1xf32>
    %22 = vector.shape_cast %19 : vector<32x1xf32> to vector<1x32x1xf32>
    tpu.vector_store %arg1[%c1_18, %c0_19, %c0_20], %22 {strides = array<i32>} : memref<2x32x1xf32, #tpu.memory_space<vmem>>, vector<1x32x1xf32>,
    %cst_21 = arith.constant dense<0.000000e+00> : vector<32xf32>
    %23 = vector.multi_reduction <add>, %17, %cst_21 [1] : vector<32x64xf32> to vector<32xf32>
    %24 = vector.shape_cast %23 : vector<32xf32> to vector<32x1xf32>
    %c1_22 = arith.constant 1 : index
    %c0_23 = arith.constant 0 : index
    %c0_24 = arith.constant 0 : index
    %25 = vector.load %arg2[%c1_22, %c0_23, %c0_24] : memref<2x32x1xf32, #tpu.memory_space<vmem>>, vector<1x32x1xf32>
    %26 = vector.shape_cast %25 : vector<1x32x1xf32> to vector<32x1xf32>
    %27 = vector.shape_cast %24 : vector<32x1xf32> to vector<1x32x1xf32>
    tpu.vector_store %arg2[%c1_22, %c0_23, %c0_24], %27 {strides = array<i32>} : memref<2x32x1xf32, #tpu.memory_space<vmem>>, vector<1x32x1xf32>,
    return
  }
}

</mosaic_0001>

<llo_original>
// kernel: tpu_custom_call.1
$region0: #{tpu_custom_call.1}
  #allocation0 [shape = 'u32[]', space=smem, size = 0x4, offset = 0x4, fixed_abs, tag = 'smem constant byte address 0x4 - core index']
  #allocation1 [shape = 'u32[144,128]{1,0:T(1,128)}', space=vmem, size = 0x12000, scoped, tag = 'internal scratch']
  %s0 = inlined_call_operand.hbm [shape: f32[2,4,32,64], index: 0, kind: input, shape index: {}]
  %s1 = inlined_call_operand.vmem [shape: f32[2,32,1], index: 1, kind: output, shape index: {0}]
  %s2 = inlined_call_operand.vmem [shape: f32[2,32,1], index: 2, kind: output, shape index: {1}]
  %3 = xla_tuple %s1, %s2
  %s4 = sld [smem:[#allocation0]]
  $region26: #{tpu_custom_call.1} parent=0
    _
  %s6 = ssub.s32 1, %s4
  %s7 = scalar_select 0, %s6, %s4
  $region1: #{tpu_custom_call.1} parent=0
    #allocation2 [shape = 'u8[131072]{0}', space=vmem, size = 0x20000, scoped, tag = 'input window, operand 0, single buffered']
    #allocation3 [shape = 's32[1]{0}', space=sflag, size = 0x4, scoped, tag = 'scoped memory for tpu_custom_call.1']
    %8 = vsyncpa [#allocation3], 0
    // Predicated region
    $region2: #{tpu_custom_call.1} parent=1 // pred_check
      _
    $region3: #{tpu_custom_call.1} parent=1 // pred_check_branch
      %10 = sbr.rel (0) target = $region5
    $region4: #{tpu_custom_call.1} parent=1 // pred_region
      %s12 = ssub.s32 4096, 4096
      %13 = vsyncadd [#allocation3], %s12
      %s14 = sshll.u32 [#allocation2], 4
      %s15 = int_to_ptr.vmem [resolvable:$true] %s14
      %20 = dma.hbm_to_vmem [thread:$0]  %s0, 4096, %s15, [#allocation3], 128, 128, 8
    $region5: #{tpu_custom_call.1} parent=1 // pred_fallthru
      _
    // Predicated region
    $region6: #{tpu_custom_call.1} parent=1 // pred_check
      _
    $region7: #{tpu_custom_call.1} parent=1 // pred_check_branch
      %22 = sbr.rel (0) target = $region9
    $region8: #{tpu_custom_call.1} parent=1 // pred_region
      %23 = dma.done [#allocation3], 4096
    $region9: #{tpu_custom_call.1} parent=1 // pred_fallthru
      _
    %v24 = vld [vmem:[#allocation2] sm:$0xff]
    %v25 = vld [vmem:[#allocation2 + $0x8] sm:$0xff]
    %v26 = vld [vmem:[#allocation2 + $0x10] sm:$0xff]
    %v27 = vld [vmem:[#allocation2 + $0x18] sm:$0xff]
    %v28 = vld [vmem:[#allocation2 + $0x20] sm:$0xff]
    %v29 = vld [vmem:[#allocation2 + $0x28] sm:$0xff]
    %v30 = vld [vmem:[#allocation2 + $0x30] sm:$0xff]
    %v31 = vld [vmem:[#allocation2 + $0x38] sm:$0xff]
    %v32 = vld [vmem:[#allocation2 + $0x40] sm:$0xff]
    %v33 = vld [vmem:[#allocation2 + $0x48] sm:$0xff]
    %v34 = vld [vmem:[#allocation2 + $0x50] sm:$0xff]
    %v35 = vld [vmem:[#allocation2 + $0x58] sm:$0xff]
    %v36 = vld [vmem:[#allocation2 + $0x60] sm:$0xff]
    %v37 = vld [vmem:[#allocation2 + $0x68] sm:$0xff]
    %v38 = vld [vmem:[#allocation2 + $0x70] sm:$0xff]
    %v39 = vld [vmem:[#allocation2 + $0x78] sm:$0xff]
    %vm40 = vcmask 523264
    %v41 = vsel %vm40, %v24, -inf
    %v42 = vsel %vm40, %v28, -inf
    %v43 = vmax.f32 %v41, %v42
    %v44 = vsel %vm40, %v32, -inf
    %v45 = vmax.f32 %v43, %v44
    %v46 = vsel %vm40, %v36, -inf
    %v47 = vmax.f32 %v45, %v46
    %v48 = vsel %vm40, %v25, -inf
    %v49 = vsel %vm40, %v29, -inf
    %v50 = vmax.f32 %v48, %v49
    %v51 = vsel %vm40, %v33, -inf
    %v52 = vmax.f32 %v50, %v51
    %v53 = vsel %vm40, %v37, -inf
    %v54 = vmax.f32 %v52, %v53
    %v55 = vsel %vm40, %v26, -inf
    %v56 = vsel %vm40, %v30, -inf
    %v57 = vmax.f32 %v55, %v56
    %v58 = vsel %vm40, %v34, -inf
    %v59 = vmax.f32 %v57, %v58
    %v60 = vsel %vm40, %v38, -inf
    %v61 = vmax.f32 %v59, %v60
    %v62 = vsel %vm40, %v27, -inf
    %v63 = vsel %vm40, %v31, -inf
    %v64 = vmax.f32 %v62, %v63
    %v65 = vsel %vm40, %v35, -inf
    %v66 = vmax.f32 %v64, %v65
    %v67 = vsel %vm40, %v39, -inf
    %v68 = vmax.f32 %v66, %v67
    %v69 = vsel %vm40, %v24, 0.0
    %v70 = vsel %vm40, %v28, 0.0
    %v71 = vadd.f32 %v69, %v70
    %v72 = vsel %vm40, %v32, 0.0
    %v73 = vadd.f32 %v71, %v72
    %v74 = vsel %vm40, %v36, 0.0
    %v75 = vadd.f32 %v73, %v74
    %v76 = vsel %vm40, %v25, 0.0
    %v77 = vsel %vm40, %v29, 0.0
    %v78 = vadd.f32 %v76, %v77
    %v79 = vsel %vm40, %v33, 0.0
    %v80 = vadd.f32 %v78, %v79
    %v81 = vsel %vm40, %v37, 0.0
    %v82 = vadd.f32 %v80, %v81
    %v83 = vsel %vm40, %v26, 0.0
    %v84 = vsel %vm40, %v30, 0.0
    %v85 = vadd.f32 %v83, %v84
    %v86 = vsel %vm40, %v34, 0.0
    %v87 = vadd.f32 %v85, %v86
    %v88 = vsel %vm40, %v38, 0.0
    %v89 = vadd.f32 %v87, %v88
    %v90 = vsel %vm40, %v27, 0.0
    %v91 = vsel %vm40, %v31, 0.0
    %v92 = vadd.f32 %v90, %v91
    %v93 = vsel %vm40, %v35, 0.0
    %v94 = vadd.f32 %v92, %v93
    %v95 = vsel %vm40, %v39, 0.0
    %v96 = vadd.f32 %v94, %v95
    %v97 = vsel %vm40, %v47, -inf
    %98 = vmax.xlane.f32.xlu0 %v97
    %v99 = vpop.xlane.xlu0 %98
    %v100 = vsel %vm40, %v54, -inf
    %101 = vmax.xlane.f32.xlu0 %v100
    %v102 = vpop.xlane.xlu0 %101
    %v103 = vsel %vm40, %v61, -inf
    %104 = vmax.xlane.f32.xlu0 %v103
    %v105 = vpop.xlane.xlu0 %104
    %v106 = vsel %vm40, %v68, -inf
    %107 = vmax.xlane.f32.xlu0 %v106
    %v108 = vpop.xlane.xlu0 %107
    %vm109 = vcmask 7168
    %110 = vst.msk [vmem:[%s1] sm:$0xff] %vm109, %v99
    %111 = vst.msk [vmem:[%s1 + $0x8] sm:$0xff] %vm109, %v102
    %112 = vst.msk [vmem:[%s1 + $0x10] sm:$0xff] %vm109, %v105
    %113 = vst.msk [vmem:[%s1 + $0x18] sm:$0xff] %vm109, %v108
    %v114 = vsel %vm40, %v75, 0.0
    %115 = vadd.xlane.f32.xlu0 %v114
    %v116 = vpop.xlane.xlu0 %115
    %v117 = vsel %vm40, %v82, 0.0
    %118 = vadd.xlane.f32.xlu0 %v117
    %v119 = vpop.xlane.xlu0 %118
    %v120 = vsel %vm40, %v89, 0.0
    %121 = vadd.xlane.f32.xlu0 %v120
    %v122 = vpop.xlane.xlu0 %121
    %v123 = vsel %vm40, %v96, 0.0
    %124 = vadd.xlane.f32.xlu0 %v123
    %v125 = vpop.xlane.xlu0 %124
    %126 = vst.msk [vmem:[%s2] sm:$0xff] %vm109, %v116
    %127 = vst.msk [vmem:[%s2 + $0x8] sm:$0xff] %vm109, %v119
    %128 = vst.msk [vmem:[%s2 + $0x10] sm:$0xff] %vm109, %v122
    %129 = vst.msk [vmem:[%s2 + $0x18] sm:$0xff] %vm109, %v125
    %s130 = scalar_lea.vmem [#allocation2], 128
    %v131 = vld [vmem:[%s130] sm:$0xff]
    %v132 = vld [vmem:[%s130 + $0x8] sm:$0xff]
    %v133 = vld [vmem:[%s130 + $0x10] sm:$0xff]
    %v134 = vld [vmem:[%s130 + $0x18] sm:$0xff]
    %v135 = vld [vmem:[%s130 + $0x20] sm:$0xff]
    %v136 = vld [vmem:[%s130 + $0x28] sm:$0xff]
    %v137 = vld [vmem:[%s130 + $0x30] sm:$0xff]
    %v138 = vld [vmem:[%s130 + $0x38] sm:$0xff]
    %v139 = vld [vmem:[%s130 + $0x40] sm:$0xff]
    %v140 = vld [vmem:[%s130 + $0x48] sm:$0xff]
    %v141 = vld [vmem:[%s130 + $0x50] sm:$0xff]
    %v142 = vld [vmem:[%s130 + $0x58] sm:$0xff]
    %v143 = vld [vmem:[%s130 + $0x60] sm:$0xff]
    %v144 = vld [vmem:[%s130 + $0x68] sm:$0xff]
    %v145 = vld [vmem:[%s130 + $0x70] sm:$0xff]
    %v146 = vld [vmem:[%s130 + $0x78] sm:$0xff]
    %v147 = vsel %vm40, %v131, -inf
    %v148 = vsel %vm40, %v135, -inf
    %v149 = vmax.f32 %v147, %v148
    %v150 = vsel %vm40, %v139, -inf
    %v151 = vmax.f32 %v149, %v150
    %v152 = vsel %vm40, %v143, -inf
    %v153 = vmax.f32 %v151, %v152
    %v154 = vsel %vm40, %v132, -inf
    %v155 = vsel %vm40, %v136, -inf
    %v156 = vmax.f32 %v154, %v155
    %v157 = vsel %vm40, %v140, -inf
    %v158 = vmax.f32 %v156, %v157
    %v159 = vsel %vm40, %v144, -inf
    %v160 = vmax.f32 %v158, %v159
    %v161 = vsel %vm40, %v133, -inf
    %v162 = vsel %vm40, %v137, -inf
    %v163 = vmax.f32 %v161, %v162
    %v164 = vsel %vm40, %v141, -inf
    %v165 = vmax.f32 %v163, %v164
    %v166 = vsel %vm40, %v145, -inf
    %v167 = vmax.f32 %v165, %v166
    %v168 = vsel %vm40, %v134, -inf
    %v169 = vsel %vm40, %v138, -inf
    %v170 = vmax.f32 %v168, %v169
    %v171 = vsel %vm40, %v142, -inf
    %v172 = vmax.f32 %v170, %v171
    %v173 = vsel %vm40, %v146, -inf
    %v174 = vmax.f32 %v172, %v173
    %v175 = vsel %vm40, %v131, 0.0
    %v176 = vsel %vm40, %v135, 0.0
    %v177 = vadd.f32 %v175, %v176
    %v178 = vsel %vm40, %v139, 0.0
    %v179 = vadd.f32 %v177, %v178
    %v180 = vsel %vm40, %v143, 0.0
    %v181 = vadd.f32 %v179, %v180
    %v182 = vsel %vm40, %v132, 0.0
    %v183 = vsel %vm40, %v136, 0.0
    %v184 = vadd.f32 %v182, %v183
    %v185 = vsel %vm40, %v140, 0.0
    %v186 = vadd.f32 %v184, %v185
    %v187 = vsel %vm40, %v144, 0.0
    %v188 = vadd.f32 %v186, %v187
    %v189 = vsel %vm40, %v133, 0.0
    %v190 = vsel %vm40, %v137, 0.0
    %v191 = vadd.f32 %v189, %v190
    %v192 = vsel %vm40, %v141, 0.0
    %v193 = vadd.f32 %v191, %v192
    %v194 = vsel %vm40, %v145, 0.0
    %v195 = vadd.f32 %v193, %v194
    %v196 = vsel %vm40, %v134, 0.0
    %v197 = vsel %vm40, %v138, 0.0
    %v198 = vadd.f32 %v196, %v197
    %v199 = vsel %vm40, %v142, 0.0
    %v200 = vadd.f32 %v198, %v199
    %v201 = vsel %vm40, %v146, 0.0
    %v202 = vadd.f32 %v200, %v201
    %v203 = vsel %vm40, %v153, -inf
    %204 = vmax.xlane.f32.xlu0 %v203
    %v205 = vpop.xlane.xlu0 %204
    %v206 = vsel %vm40, %v160, -inf
    %207 = vmax.xlane.f32.xlu0 %v206
    %v208 = vpop.xlane.xlu0 %207
    %v209 = vsel %vm40, %v167, -inf
    %210 = vmax.xlane.f32.xlu0 %v209
    %v211 = vpop.xlane.xlu0 %210
    %v212 = vsel %vm40, %v174, -inf
    %213 = vmax.xlane.f32.xlu0 %v212
    %v214 = vpop.xlane.xlu0 %213
    %s215 = scalar_lea.vmem %s1, 32
    %216 = vst.msk [vmem:[%s215] sm:$0xff] %vm109, %v205
    %217 = vst.msk [vmem:[%s215 + $0x8] sm:$0xff] %vm109, %v208
    %218 = vst.msk [vmem:[%s215 + $0x10] sm:$0xff] %vm109, %v211
    %219 = vst.msk [vmem:[%s215 + $0x18] sm:$0xff] %vm109, %v214
    %v220 = vsel %vm40, %v181, 0.0
    %221 = vadd.xlane.f32.xlu0 %v220
    %v222 = vpop.xlane.xlu0 %221
    %v223 = vsel %vm40, %v188, 0.0
    %224 = vadd.xlane.f32.xlu0 %v223
    %v225 = vpop.xlane.xlu0 %224
    %v226 = vsel %vm40, %v195, 0.0
    %227 = vadd.xlane.f32.xlu0 %v226
    %v228 = vpop.xlane.xlu0 %227
    %v229 = vsel %vm40, %v202, 0.0
    %230 = vadd.xlane.f32.xlu0 %v229
    %v231 = vpop.xlane.xlu0 %230
    %s232 = scalar_lea.vmem %s2, 32
    %233 = vst.msk [vmem:[%s232] sm:$0xff] %vm109, %v222
    %234 = vst.msk [vmem:[%s232 + $0x8] sm:$0xff] %vm109, %v225
    %235 = vst.msk [vmem:[%s232 + $0x10] sm:$0xff] %vm109, %v228
    %236 = vst.msk [vmem:[%s232 + $0x18] sm:$0xff] %vm109, %v231
    // Predicated region
    $region10: #{tpu_custom_call.1} parent=1 // pred_check
      _
    $region11: #{tpu_custom_call.1} parent=1 // pred_check_branch
      %238 = sbr.rel (0) target = $region13
    $region12: #{tpu_custom_call.1} parent=1 // pred_region
      _
    $region13: #{tpu_custom_call.1} parent=1 // pred_fallthru
      _
    // Predicated region
    $region14: #{tpu_custom_call.1} parent=1 // pred_check
      _
    $region15: #{tpu_custom_call.1} parent=1 // pred_check_branch
      %240 = sbr.rel (0) target = $region17
    $region16: #{tpu_custom_call.1} parent=1 // pred_region
      _
    $region17: #{tpu_custom_call.1} parent=1 // pred_fallthru
      _
    // Predicated region
    $region18: #{tpu_custom_call.1} parent=1 // pred_check
      _
    $region19: #{tpu_custom_call.1} parent=1 // pred_check_branch
      %242 = sbr.rel (0) target = $region21
    $region20: #{tpu_custom_call.1} parent=1 // pred_region
      _
    $region21: #{tpu_custom_call.1} parent=1 // pred_fallthru
      _
    // Predicated region
    $region22: #{tpu_custom_call.1} parent=1 // pred_check
      _
    $region23: #{tpu_custom_call.1} parent=1 // pred_check_branch
      %244 = sbr.rel (0) target = $region25
    $region24: #{tpu_custom_call.1} parent=1 // pred_region
      _
    $region25: #{tpu_custom_call.1} parent=1 // pred_fallthru
      _
    %245 = vsyncpa [#allocation3], 1

</llo_original>
